<compile_context>
chip_gen: v7x
topology: tpu7x:2x2x1
jax: 0.10.0
libtpu: 0.0.40
codegen_flags: <defaults>
</compile_context>

<pallas_src>
import functools

import jax
import jax.numpy as jnp
from jax.experimental import pallas as pl
from jax.experimental.pallas import tpu as pltpu


# ----------------------------------------------------------------------------
# One-time weight preparation (weight / LoRA load time, NOT per forward call).
# ----------------------------------------------------------------------------
def _vmem_capacity_bytes():
    try:
        return int(pltpu.get_tpu_info().vmem_capacity_bytes)
    except Exception:
        return 64 * 1024 * 1024            # v7x per-TC capacity; safe lower bound


def _pick_vocab_tile(vpad, h, lr_pad, itemsize, budget_bytes, t_nominal=256):
    """Largest vocab tile (lanes) that divides Vpad and fits the VMEM budget."""
    assert vpad % 128 == 0, "padded vocab must be a multiple of 128"
    for tv in (1024, 512, 256, 128):
        if vpad % tv:
            continue
        need = (2 * tv * h * itemsize          # lm_head tile (double-buffered)
                + tv * h * itemsize            # emb DMA scratch (single buffer)
                + 2 * lr_pad * tv * itemsize   # stacked lora_b tile (double-buf)
                + 2 * t_nominal * tv * 4       # f32 logits tile (double-buf)
                + 2 * h * lr_pad * itemsize    # resident stacked lora_a
                + 2 * t_nominal * h * itemsize # resident hidden states
                + (2 << 20))                   # compiler scratch slack
        if need <= budget_bytes or tv == 128:
            return tv
    return 128


def prepare_logits_lora_weights(lm_head_w, emb_tensors, lora_a, lora_b, *,
                                org_vocab_size, vocab_size,
                                compute_dtype=jnp.bfloat16, tv=None):
    """Cache re-laid-out / casted weight operands (call once at load time).

    lm_head_w:   [Vpad, H]        lm_head weight (lora-vocab padded)
    emb_tensors: [L, E, H]        per-lora extra-vocab embeddings (may hold -inf)
    lora_a:      [L, 1, r, H]     lora_a_stacked
    lora_b:      [L, 1, Vpad, r]  lora_b_stacked
    compute_dtype: MXU input dtype for weights/activations; accumulation stays
                   f32.  bf16 is a deliberate, documented precision trade-off.
    """
    Vpad, H = lm_head_w.shape
    L, E, He = emb_tensors.shape
    r = lora_a.shape[2]
    assert He == H and lora_a.shape[3] == H
    assert lora_b.shape[2] == Vpad and lora_b.shape[3] == r
    assert H % 8 == 0
    assert org_vocab_size + E <= vocab_size <= Vpad

    cd = jnp.dtype(compute_dtype)
    lr = L * r
    lr_pad = -(-lr // 16) * 16                 # packed-sublane multiple

    cap = _vmem_capacity_bytes()
    if tv is None:
        tv = _pick_vocab_tile(Vpad, H, lr_pad, cd.itemsize, int(cap * 0.70))
    assert Vpad % tv == 0 and tv % 128 == 0

    # lm_head pre-transposed: lane-dense along vocab, canonical (K, N) matmul.
    wt = jnp.transpose(lm_head_w.astype(cd))                       # [H, Vpad]

    # Stacked LoRA A -> [H, L*r] (zero rows for padding contribute nothing).
    a_all = lora_a[:, 0].reshape(lr, H)
    a_all = jnp.pad(a_all, ((0, lr_pad - lr), (0, 0)))
    a_all_t = jnp.transpose(a_all).astype(cd)                      # [H, lr_pad]

    # Stacked LoRA B -> [L*r, Vpad], lane-dense along vocab.
    b_all = jnp.transpose(lora_b[:, 0], (0, 2, 1)).reshape(lr, Vpad)
    b_all = jnp.pad(b_all, ((0, lr_pad - lr), (0, 0))).astype(cd)  # [lr_pad, Vpad]

    # Extra-vocab embeddings in vocab-tile-aligned layout [L, n_et, H, tv] so an
    # in-kernel DMA of one (slot, tile) is a single contiguous copy.
    if E > 0:
        v_lo = org_vocab_size // tv
        v_hi = (org_vocab_size + E - 1) // tv
        n_et = v_hi - v_lo + 1
        shift = org_vocab_size - v_lo * tv
        emb_pad = jnp.zeros((L, n_et * tv, H), cd)
        emb_pad = jax.lax.dynamic_update_slice(emb_pad, emb_tensors.astype(cd),
                                               (0, shift, 0))
        emb_prep = jnp.transpose(emb_pad.reshape(L, n_et, tv, H), (0, 1, 3, 2))
    else:
        v_lo = v_hi = 0
        emb_prep = None

    vmem_limit = min(int(cap * 0.82), cap - (8 << 20))
    return dict(wt=wt, a_all_t=a_all_t, b_all=b_all, emb=emb_prep,
                tv=tv, v_lo=v_lo, v_hi=v_hi, H=H, L=L, r=r, lr_pad=lr_pad,
                E=E, Vpad=Vpad, org=org_vocab_size, vocab=vocab_size,
                cd=cd, vmem_limit=vmem_limit)


# ----------------------------------------------------------------------------
# Fused kernel: one grid step == one vocab tile (base + LoRA + epilogue).
# ----------------------------------------------------------------------------
def _fused_logits_kernel(nact_ref, ids_ref,                    # scalar prefetch
                         tok_ref, hs_ref, w_ref, a_ref, b_ref, *rest,
                         tv, rank, org, extra, v_lo, v_hi,
                         scale, soft_cap, has_extra):
    if has_extra:
        emb_hbm, o_ref, emb_vmem, emb_sem = rest
    else:
        (o_ref,) = rest

    v = pl.program_id(0)
    nact = nact_ref[0]
    hs = hs_ref[...]                                           # (T, H) bf16

    # ---- base logits tile: (T, H) @ (H, tv), lane-dense, no transpose -------
    acc = jax.lax.dot_general(hs, w_ref[...], (((1,), (0,)), ((), ())),
                              preferred_element_type=jnp.float32)

    if has_extra:
        col = v * tv + jax.lax.broadcasted_iota(jnp.int32, (1, tv), 1)
        in_extra = jnp.logical_and(col >= org, col < org + extra)
        acc = jnp.where(in_extra, -jnp.inf, acc)   # "no-LoRA" extra-vocab value

    o_ref[...] = acc                                # output block is resident

    # ---- per-token OVERWRITE of extra-vocab columns (active slots only) -----
    if has_extra:
        @pl.when(jnp.logical_and(v >= v_lo, v <= v_hi))
        def _overwrite():
            e_blk = v - v_lo

            @pl.loop(0, nact)
            def _(l):
                slot = ids_ref[l]
                cp = pltpu.make_async_copy(emb_hbm.at[slot, e_blk], emb_vmem,
                                           emb_sem)
                cp.start()
                cp.wait()
                ext = jax.lax.dot_general(hs, emb_vmem[...],
                                          (((1,), (0,)), ((), ())),
                                          preferred_element_type=jnp.float32)
                ext = jnp.where(jnp.isnan(ext), -jnp.inf, ext)
                sel = jnp.logical_and(tok_ref[...] == slot, in_extra)
                o_ref[...] = jnp.where(sel, ext, o_ref[...])

    # ---- LoRA expand: zero-masked shrink + ONE stacked-B matmul per tile ----
    @pl.when(nact > 0)
    def _expand():
        mid = jax.lax.dot_general(hs, a_ref[...], (((1,), (0,)), ((), ())),
                                  preferred_element_type=jnp.float32)  # (T, L*r)
        c = jax.lax.broadcasted_iota(jnp.int32, mid.shape, 1)
        lo = tok_ref[...] * rank                    # (T, 1); slot==L keeps zeros
        keep = jnp.logical_and(c >= lo, c < lo + rank)
        mid = jnp.where(keep, mid, 0.0)
        contrib = jax.lax.dot_general(mid.astype(b_ref.dtype), b_ref[...],
                                      (((1,), (0,)), ((), ())),
                                      preferred_element_type=jnp.float32)
        o_ref[...] = o_ref[...] + contrib

    # ---- epilogue: tanh soft cap (EUP) + scale; ragged last tile is masked ---
    if soft_cap is not None or scale != 1.0:
        x = o_ref[...]
        if soft_cap is not None:
            x = jnp.tanh(x * (1.0 / soft_cap)) * soft_cap
        if scale != 1.0:
            x = x * scale
        o_ref[...] = x


# ----------------------------------------------------------------------------
# Per-call hot path.
# ----------------------------------------------------------------------------
def logits_processor_with_lora(prep, hs, lora_idx, *, scale=1.0, soft_cap=None):
    """Fused LogitsProcessorWithLoRA._get_logits + LogitsProcessor epilogue.

    hs:       [T, H]     sampled-token hidden states
    lora_idx: [T] int32  per-token lora slot; value == L means "no lora"
    """
    # TODO(synk): sampling-metadata hidden-state pruning, embedding_bias,
    # tensor_model_parallel_gather and sharded_to_full_mapping reindex are
    # identity / None here (tp_size=1, mapping=None, bias=None).
    T, H = hs.shape
    assert H == prep["H"]
    L, r, tv = prep["L"], prep["r"], prep["tv"]
    E, org, vocab = prep["E"], prep["org"], prep["vocab"]
    cd = prep["cd"]
    has_extra = E > 0

    # Pad tokens to a sublane multiple so logits stores stay unmasked.
    Tp = -(-T // 8) * 8
    hs_c = hs.astype(cd)
    tok = lora_idx.astype(jnp.int32)
    if Tp != T:
        hs_c = jnp.pad(hs_c, ((0, Tp - T), (0, 0)))
        tok = jnp.pad(tok, (0, Tp - T), constant_values=L)     # pad => no lora
    tok = tok.reshape(Tp, 1)

    # Active-slot compaction (scalar prefetch): the extra-vocab overwrite loop
    # only visits slots actually referenced by this batch.
    slots = jnp.arange(L, dtype=jnp.int32)
    is_active = jnp.any(lora_idx[None, :] == slots[:, None], axis=1)
    nact = jnp.sum(is_active.astype(jnp.int32)).reshape(1)
    active_ids = slots[jnp.argsort(jnp.where(is_active, slots, slots + L))]
    active_ids = active_ids.astype(jnp.int32)

    n_vt = pl.cdiv(vocab, tv)
    v_lo, v_hi = prep["v_lo"], prep["v_hi"]

    kern = functools.partial(
        _fused_logits_kernel, tv=tv, rank=r, org=org, extra=E,
        v_lo=v_lo, v_hi=v_hi, scale=float(scale),
        soft_cap=None if soft_cap is None else float(soft_cap),
        has_extra=has_extra)

    in_specs = [
        pl.BlockSpec((Tp, 1), lambda v, n, i: (0, 0)),               # lora_idx
        pl.BlockSpec((Tp, H), lambda v, n, i: (0, 0)),               # hidden states
        pl.BlockSpec((H, tv), lambda v, n, i: (0, v)),               # lm_head.T
        pl.BlockSpec((H, prep["lr_pad"]), lambda v, n, i: (0, 0)),   # stacked A.T
        # stacked B tile; pinned to block 0 when no LoRA is active (no re-DMAs)
        pl.BlockSpec((prep["lr_pad"], tv),
                     lambda v, n, i: (0, jnp.where(n[0] > 0, v, 0))),
    ]
    args = [nact, active_ids, tok, hs_c, prep["wt"], prep["a_all_t"],
            prep["b_all"]]
    scratch = []
    if has_extra:
        in_specs.append(pl.BlockSpec(memory_space=pl.ANY))           # emb in HBM
        args.append(prep["emb"])
        scratch = [pltpu.VMEM((H, tv), cd), pltpu.SemaphoreType.DMA]

    out = pl.pallas_call(
        kern,
        out_shape=jax.ShapeDtypeStruct((Tp, vocab), jnp.float32),
        grid_spec=pltpu.PrefetchScalarGridSpec(
            num_scalar_prefetch=2,
            grid=(n_vt,),
            in_specs=in_specs,
            out_specs=pl.BlockSpec((Tp, tv), lambda v, n, i: (0, v)),
            scratch_shapes=scratch),
        compiler_params=pltpu.CompilerParams(
            dimension_semantics=("parallel",),
            vmem_limit_bytes=prep["vmem_limit"]),
    )(*args)

    return out if Tp == T else out[:T]


# ----------------------------- pure-JAX reference ---------------------------
def reference(hs, w, emb, la, lb, idx, org, vocab, scale, soft_cap):
    L, E, _ = emb.shape
    T = hs.shape[0]
    logits = hs @ w.T
    lora_logits = jnp.einsum("leh,th->lte", emb, hs)
    lora_logits = jnp.concatenate(
        [lora_logits, jnp.full((1, T, E), -jnp.inf, jnp.float32)], axis=0)
    sel = lora_logits[idx, jnp.arange(T)]
    sel = jnp.where(jnp.isnan(sel), -jnp.inf, sel)
    logits = logits.at[:, org:org + E].set(sel)
    mid = jnp.einsum("th,lrh->ltr", hs, la[:, 0])
    exp = jnp.einsum("ltr,lvr->ltv", mid, lb[:, 0])
    onehot = (idx[None, :] == jnp.arange(L)[:, None]).astype(jnp.float32)
    logits = logits + jnp.einsum("lt,ltv->tv", onehot, exp)
    logits = logits[:, :vocab]
    if soft_cap is not None:
        logits = jnp.tanh(logits / soft_cap) * soft_cap
    if scale != 1.0:
        logits = logits * scale
    return logits


if __name__ == "__main__":
    T, H, R = 8, 128, 16          # tokens, hidden_size, max_lora_rank
    L = 3                         # max_loras
    ORG_VOCAB = 384               # base_layer.org_vocab_size
    EXTRA_VOCAB = 256             # lora_config.lora_extra_vocab_size
    VOCAB = ORG_VOCAB + EXTRA_VOCAB          # base_layer.vocab_size = 640
    VPAD = 768                    # ceil(vocab / lora_vocab_padding=256) * 256
    SCALE, SOFT_CAP = 0.5, 30.0

    key = jax.random.PRNGKey(0)
    ks = jax.random.split(key, 5)
    hs = jax.random.normal(ks[0], (T, H), jnp.float32) * 0.5
    lm_head_w = jax.random.normal(ks[1], (VPAD, H), jnp.float32) * 0.05
    emb_tensors = jax.random.normal(ks[2], (L, EXTRA_VOCAB, H), jnp.float32) * 0.05
    lora_a = jax.random.normal(ks[3], (L, 1, R, H), jnp.float32) * 0.05
    lora_b = jax.random.normal(ks[4], (L, 1, VPAD, R), jnp.float32) * 0.05
    # per-token lora slot (punica sampler_indices_padded); value == L => no lora.
    # Slot 1 is never referenced -> exercises active-slot compaction.
    lora_idx = jnp.array([0, 2, 3, 0, 2, 3, 2, 0], jnp.int32)

    # Weight-load-time preparation (cached across calls; not in the hot path).
    prep = prepare_logits_lora_weights(
        lm_head_w, emb_tensors, lora_a, lora_b,
        org_vocab_size=ORG_VOCAB, vocab_size=VOCAB)
    prep = jax.tree_util.tree_map(
        lambda x: jax.block_until_ready(x) if isinstance(x, jax.Array) else x,
        prep)

    out = logits_processor_with_lora(prep, hs, lora_idx,
                                     scale=SCALE, soft_cap=SOFT_CAP)
    out = jax.block_until_ready(out)

    ref = reference(hs, lm_head_w, emb_tensors, lora_a, lora_b, lora_idx,
                    ORG_VOCAB, VOCAB, SCALE, SOFT_CAP)
    assert out.shape == (T, VOCAB), out.shape
    assert jnp.allclose(out, ref, rtol=2e-2, atol=2e-2), float(
        jnp.max(jnp.abs(out - ref)))
    print("KERNEL_OK")
</pallas_src>

<mosaic_0001>
module attributes {stable_mosaic.version = 11 : i64} {
  func.func @_fused_logits_kernel(%arg0: i32, %arg1: memref<1xi32, #tpu.memory_space<smem>>, %arg2: memref<3xi32, #tpu.memory_space<smem>>, %arg3: memref<8x1xi32, #tpu.memory_space<vmem>>, %arg4: memref<8x128xbf16, #tpu.memory_space<vmem>>, %arg5: memref<128x256xbf16, #tpu.memory_space<vmem>>, %arg6: memref<128x48xbf16, #tpu.memory_space<vmem>>, %arg7: memref<48x256xbf16, #tpu.memory_space<vmem>>, %arg8: memref<3x2x128x256xbf16, #tpu.memory_space<any>>, %arg9: memref<8x256xf32, #tpu.memory_space<vmem>>, %arg10: memref<128x256xbf16, #tpu.memory_space<vmem>>, %arg11: memref<!tpu.dma_semaphore, #tpu.memory_space<semaphore_mem>>) attributes {dimension_semantics = [#tpu.dimension_semantics<parallel>], iteration_bounds = array<i64: 3>, scalar_prefetch = 2 : i64, scratch_operands = 2 : i64, tpu.core_type = #tpu.core_type<tc>, window_params = [{pipeline_mode = #tpu.pipeline_mode<synchronous>, transform_indices = @transform_0, window_bounds = array<i64: 8, 1>}, {pipeline_mode = #tpu.pipeline_mode<synchronous>, transform_indices = @transform_1, window_bounds = array<i64: 8, 128>}, {transform_indices = @transform_2, window_bounds = array<i64: 128, 256>}, {pipeline_mode = #tpu.pipeline_mode<synchronous>, transform_indices = @transform_3, window_bounds = array<i64: 128, 48>}, {transform_indices = @transform_4, window_bounds = array<i64: 48, 256>}, {}, {transform_indices = @transform_6, window_bounds = array<i64: 8, 256>}]} {
    %c0 = arith.constant 0 : index
    %0 = memref.load %arg1[%c0] : memref<1xi32, #tpu.memory_space<smem>>
    %c0_0 = arith.constant 0 : index
    %c0_1 = arith.constant 0 : index
    %1 = vector.load %arg4[%c0_0, %c0_1] : memref<8x128xbf16, #tpu.memory_space<vmem>>, vector<8x128xbf16>
    %c0_2 = arith.constant 0 : index
    %c0_3 = arith.constant 0 : index
    %2 = vector.load %arg5[%c0_2, %c0_3] : memref<128x256xbf16, #tpu.memory_space<vmem>>, vector<128x256xbf16>
    %cst = arith.constant dense<0.000000e+00> : vector<8x256xf32>
    %3 = tpu.matmul %1, %2, %cst {dimension_numbers = #tpu.dot_dimension_numbers<[1], [0], [0], [1], [0, 0, 1, 1], [], []>} : vector<8x128xbf16>, vector<128x256xbf16>, vector<8x256xf32> -> vector<8x256xf32>
    %c256_i32 = arith.constant 256 : i32
    %4 = arith.muli %arg0, %c256_i32 : i32
    %5 = tpu.iota {dimensions = array<i32: 1>} : vector<1x256xi32>
    %6 = vector.broadcast %4 : i32 to vector<1x256xi32>
    %7 = arith.addi %6, %5 : vector<1x256xi32>
    %c384_i32 = arith.constant 384 : i32
    %8 = vector.broadcast %c384_i32 : i32 to vector<1x256xi32>
    %9 = arith.cmpi sge, %7, %8 : vector<1x256xi32>
    %c640_i32 = arith.constant 640 : i32
    %10 = vector.broadcast %c640_i32 : i32 to vector<1x256xi32>
    %11 = arith.cmpi slt, %7, %10 : vector<1x256xi32>
    %12 = arith.andi %9, %11 : vector<1x256xi1>
    %cst_4 = arith.constant 0xFF800000 : f32
    %13 = vector.shape_cast %12 : vector<1x256xi1> to vector<1x256xi1>
    %14 = vector.broadcast %13 : vector<1x256xi1> to vector<8x256xi1>
    %15 = vector.broadcast %cst_4 : f32 to vector<8x256xf32>
    %16 = arith.select %14, %15, %3 : vector<8x256xi1>, vector<8x256xf32>
    %c0_5 = arith.constant 0 : index
    %c0_6 = arith.constant 0 : index
    %17 = vector.load %arg9[%c0_5, %c0_6] : memref<8x256xf32, #tpu.memory_space<vmem>>, vector<8x256xf32>
    tpu.vector_store %arg9[%c0_5, %c0_6], %16 {strides = array<i32>} : memref<8x256xf32, #tpu.memory_space<vmem>>, vector<8x256xf32>,
    %c1_i32 = arith.constant 1 : i32
    %18 = arith.cmpi sge, %arg0, %c1_i32 : i32
    %c2_i32 = arith.constant 2 : i32
    %19 = arith.cmpi sle, %arg0, %c2_i32 : i32
    %20 = arith.andi %18, %19 : i1
    %21 = arith.extui %20 : i1 to i32
    %c0_i32 = arith.constant 0 : i32
    %22 = arith.cmpi ne, %21, %c0_i32 : i32
    scf.if %22 {
      %c1_i32_16 = arith.constant 1 : i32
      %35 = arith.subi %arg0, %c1_i32_16 : i32
      %c0_i32_17 = arith.constant 0 : i32
      %36 = arith.subi %0, %c0_i32_17 : i32
      %c1_i32_18 = arith.constant 1 : i32
      %c1_i32_19 = arith.constant 1 : i32
      %37 = arith.subi %c1_i32_18, %c1_i32_19 : i32
      %38 = arith.addi %36, %37 : i32
      %c1_i32_20 = arith.constant 1 : i32
      %39 = arith.divsi %38, %c1_i32_20 : i32
      %c1_i32_21 = arith.constant 1 : i32
      %c0_i32_22 = arith.constant 0 : i32
      %c0_i32_23 = arith.constant 0 : i32
      %40 = arith.subi %39, %c0_i32_23 : i32
      %41 = arith.addi %c0_i32_23, %40 : i32
      %c1_i32_24 = arith.constant 1 : i32
      scf.for %arg12 = %c0_i32_23 to %41 step %c1_i32_24  : i32 {
        %42 = arith.muli %arg12, %c1_i32_21 : i32
        %43 = arith.addi %c0_i32_22, %42 : i32
        %44 = arith.index_cast %43 : i32 to index
        %45 = memref.load %arg2[%44] : memref<3xi32, #tpu.memory_space<smem>>
        %c0_i32_25 = arith.constant 0 : i32
        %c0_i32_26 = arith.constant 0 : i32
        %46 = tpu.memref_slice %arg8[%45, %35, %c0_i32_25, %c0_i32_26] : memref<3x2x128x256xbf16, #tpu.memory_space<any>> -> memref<1x1x128x256xbf16, #tpu.memory_space<any>>
        %47 = tpu.memref_squeeze %46 : memref<1x1x128x256xbf16, #tpu.memory_space<any>> -> memref<128x256xbf16, #tpu.memory_space<any>>
        tpu.enqueue_dma source(%47 : memref<128x256xbf16, #tpu.memory_space<any>>) target(%arg10 : memref<128x256xbf16, #tpu.memory_space<vmem>>) target_semaphore(%arg11 : memref<!tpu.dma_semaphore, #tpu.memory_space<semaphore_mem>>)
        %c0_i32_27 = arith.constant 0 : i32
        %c0_i32_28 = arith.constant 0 : i32
        %48 = tpu.memref_slice %arg8[%45, %35, %c0_i32_27, %c0_i32_28] : memref<3x2x128x256xbf16, #tpu.memory_space<any>> -> memref<1x1x128x256xbf16, #tpu.memory_space<any>>
        %49 = tpu.memref_squeeze %48 : memref<1x1x128x256xbf16, #tpu.memory_space<any>> -> memref<128x256xbf16, #tpu.memory_space<any>>
        tpu.wait_dma2 semaphore(%arg11 : memref<!tpu.dma_semaphore, #tpu.memory_space<semaphore_mem>>) src(%49 : memref<128x256xbf16, #tpu.memory_space<any>>) dst(%arg10 : memref<128x256xbf16, #tpu.memory_space<vmem>>)
        %c0_29 = arith.constant 0 : index
        %c0_30 = arith.constant 0 : index
        %50 = vector.load %arg10[%c0_29, %c0_30] : memref<128x256xbf16, #tpu.memory_space<vmem>>, vector<128x256xbf16>
        %cst_31 = arith.constant dense<0.000000e+00> : vector<8x256xf32>
        %51 = tpu.matmul %1, %50, %cst_31 {dimension_numbers = #tpu.dot_dimension_numbers<[1], [0], [0], [1], [0, 0, 1, 1], [], []>} : vector<8x128xbf16>, vector<128x256xbf16>, vector<8x256xf32> -> vector<8x256xf32>
        %52 = arith.cmpf one, %51, %51 : vector<8x256xf32>
        %cst_32 = arith.constant 0xFF800000 : f32
        %53 = vector.broadcast %cst_32 : f32 to vector<8x256xf32>
        %54 = arith.select %52, %53, %51 : vector<8x256xi1>, vector<8x256xf32>
        %c0_33 = arith.constant 0 : index
        %c0_34 = arith.constant 0 : index
        %55 = vector.load %arg3[%c0_33, %c0_34] : memref<8x1xi32, #tpu.memory_space<vmem>>, vector<8x1xi32>
        %56 = vector.broadcast %45 : i32 to vector<8x1xi32>
        %57 = arith.cmpi eq, %55, %56 : vector<8x1xi32>
        %58 = vector.broadcast %57 : vector<8x1xi1> to vector<8x256xi1>
        %59 = vector.broadcast %12 : vector<1x256xi1> to vector<8x256xi1>
        %60 = arith.andi %58, %59 : vector<8x256xi1>
        %c0_35 = arith.constant 0 : index
        %c0_36 = arith.constant 0 : index
        %61 = vector.load %arg9[%c0_35, %c0_36] : memref<8x256xf32, #tpu.memory_space<vmem>>, vector<8x256xf32>
        %62 = arith.select %60, %54, %61 : vector<8x256xi1>, vector<8x256xf32>
        %c0_37 = arith.constant 0 : index
        %c0_38 = arith.constant 0 : index
        %63 = vector.load %arg9[%c0_37, %c0_38] : memref<8x256xf32, #tpu.memory_space<vmem>>, vector<8x256xf32>
        tpu.vector_store %arg9[%c0_37, %c0_38], %62 {strides = array<i32>} : memref<8x256xf32, #tpu.memory_space<vmem>>, vector<8x256xf32>,
      }
    } else {
    }
    %c0_i32_7 = arith.constant 0 : i32
    %23 = arith.cmpi sgt, %0, %c0_i32_7 : i32
    %24 = arith.extui %23 : i1 to i32
    %c0_i32_8 = arith.constant 0 : i32
    %25 = arith.cmpi ne, %24, %c0_i32_8 : i32
    scf.if %25 {
      %c0_16 = arith.constant 0 : index
      %c0_17 = arith.constant 0 : index
      %35 = vector.load %arg6[%c0_16, %c0_17] : memref<128x48xbf16, #tpu.memory_space<vmem>>, vector<128x48xbf16>
      %cst_18 = arith.constant dense<0.000000e+00> : vector<8x48xf32>
      %36 = tpu.matmul %1, %35, %cst_18 {dimension_numbers = #tpu.dot_dimension_numbers<[1], [0], [0], [1], [0, 0, 1, 1], [], []>} : vector<8x128xbf16>, vector<128x48xbf16>, vector<8x48xf32> -> vector<8x48xf32>
      %37 = tpu.iota {dimensions = array<i32: 1>} : vector<8x48xi32>
      %c0_19 = arith.constant 0 : index
      %c0_20 = arith.constant 0 : index
      %38 = vector.load %arg3[%c0_19, %c0_20] : memref<8x1xi32, #tpu.memory_space<vmem>>, vector<8x1xi32>
      %c16_i32 = arith.constant 16 : i32
      %39 = vector.broadcast %c16_i32 : i32 to vector<8x1xi32>
      %40 = arith.muli %38, %39 : vector<8x1xi32>
      %41 = vector.broadcast %40 : vector<8x1xi32> to vector<8x48xi32>
      %42 = arith.cmpi sge, %37, %41 : vector<8x48xi32>
      %c16_i32_21 = arith.constant 16 : i32
      %43 = vector.broadcast %c16_i32_21 : i32 to vector<8x1xi32>
      %44 = arith.addi %40, %43 : vector<8x1xi32>
      %45 = vector.broadcast %44 : vector<8x1xi32> to vector<8x48xi32>
      %46 = arith.cmpi slt, %37, %45 : vector<8x48xi32>
      %47 = arith.andi %42, %46 : vector<8x48xi1>
      %cst_22 = arith.constant 0.000000e+00 : f32
      %48 = vector.broadcast %cst_22 : f32 to vector<8x48xf32>
      %49 = arith.select %47, %36, %48 : vector<8x48xi1>, vector<8x48xf32>
      %50 = arith.truncf %49 : vector<8x48xf32> to vector<8x48xbf16>
      %c0_23 = arith.constant 0 : index
      %c0_24 = arith.constant 0 : index
      %51 = vector.load %arg7[%c0_23, %c0_24] : memref<48x256xbf16, #tpu.memory_space<vmem>>, vector<48x256xbf16>
      %cst_25 = arith.constant dense<0.000000e+00> : vector<8x256xf32>
      %52 = tpu.matmul %50, %51, %cst_25 {dimension_numbers = #tpu.dot_dimension_numbers<[1], [0], [0], [1], [0, 0, 1, 1], [], []>} : vector<8x48xbf16>, vector<48x256xbf16>, vector<8x256xf32> -> vector<8x256xf32>
      %c0_26 = arith.constant 0 : index
      %c0_27 = arith.constant 0 : index
      %53 = vector.load %arg9[%c0_26, %c0_27] : memref<8x256xf32, #tpu.memory_space<vmem>>, vector<8x256xf32>
      %54 = arith.addf %53, %52 : vector<8x256xf32>
      %c0_28 = arith.constant 0 : index
      %c0_29 = arith.constant 0 : index
      %55 = vector.load %arg9[%c0_28, %c0_29] : memref<8x256xf32, #tpu.memory_space<vmem>>, vector<8x256xf32>
      tpu.vector_store %arg9[%c0_28, %c0_29], %54 {strides = array<i32>} : memref<8x256xf32, #tpu.memory_space<vmem>>, vector<8x256xf32>,
    } else {
    }
    %c0_9 = arith.constant 0 : index
    %c0_10 = arith.constant 0 : index
    %26 = vector.load %arg9[%c0_9, %c0_10] : memref<8x256xf32, #tpu.memory_space<vmem>>, vector<8x256xf32>
    %cst_11 = arith.constant 0.0333333351 : f32
    %27 = vector.broadcast %cst_11 : f32 to vector<8x256xf32>
    %28 = arith.mulf %26, %27 : vector<8x256xf32>
    %29 = math.tanh %28 : vector<8x256xf32>
    %cst_12 = arith.constant 3.000000e+01 : f32
    %30 = vector.broadcast %cst_12 : f32 to vector<8x256xf32>
    %31 = arith.mulf %29, %30 : vector<8x256xf32>
    %cst_13 = arith.constant 5.000000e-01 : f32
    %32 = vector.broadcast %cst_13 : f32 to vector<8x256xf32>
    %33 = arith.mulf %31, %32 : vector<8x256xf32>
    %c0_14 = arith.constant 0 : index
    %c0_15 = arith.constant 0 : index
    %34 = vector.load %arg9[%c0_14, %c0_15] : memref<8x256xf32, #tpu.memory_space<vmem>>, vector<8x256xf32>
    tpu.vector_store %arg9[%c0_14, %c0_15], %33 {strides = array<i32>} : memref<8x256xf32, #tpu.memory_space<vmem>>, vector<8x256xf32>,
    return
  }
  func.func @transform_0(%arg0: i32, %arg1: memref<1xi32, #tpu.memory_space<smem>>, %arg2: memref<3xi32, #tpu.memory_space<smem>>) -> (i32, i32) {
    %c0_i32 = arith.constant 0 : i32
    %c0_i32_0 = arith.constant 0 : i32
    %c0_i32_1 = arith.constant 0 : i32
    return %c0_i32, %c0_i32_0 : i32, i32
  }
  func.func @transform_1(%arg0: i32, %arg1: memref<1xi32, #tpu.memory_space<smem>>, %arg2: memref<3xi32, #tpu.memory_space<smem>>) -> (i32, i32) {
    %c0_i32 = arith.constant 0 : i32
    %c0_i32_0 = arith.constant 0 : i32
    %c0_i32_1 = arith.constant 0 : i32
    return %c0_i32, %c0_i32_0 : i32, i32
  }
  func.func @transform_2(%arg0: i32, %arg1: memref<1xi32, #tpu.memory_space<smem>>, %arg2: memref<3xi32, #tpu.memory_space<smem>>) -> (i32, i32) {
    %c0_i32 = arith.constant 0 : i32
    %c0_i32_0 = arith.constant 0 : i32
    return %c0_i32, %arg0 : i32, i32
  }
  func.func @transform_3(%arg0: i32, %arg1: memref<1xi32, #tpu.memory_space<smem>>, %arg2: memref<3xi32, #tpu.memory_space<smem>>) -> (i32, i32) {
    %c0_i32 = arith.constant 0 : i32
    %c0_i32_0 = arith.constant 0 : i32
    %c0_i32_1 = arith.constant 0 : i32
    return %c0_i32, %c0_i32_0 : i32, i32
  }
  func.func @transform_4(%arg0: i32, %arg1: memref<1xi32, #tpu.memory_space<smem>>, %arg2: memref<3xi32, #tpu.memory_space<smem>>) -> (i32, i32) {
    %c0 = arith.constant 0 : index
    %0 = memref.load %arg1[%c0] : memref<1xi32, #tpu.memory_space<smem>>
    %c0_i32 = arith.constant 0 : i32
    %1 = arith.cmpi sgt, %0, %c0_i32 : i32
    %c0_i32_0 = arith.constant 0 : i32
    %2 = arith.select %1, %arg0, %c0_i32_0 : i32
    %c0_i32_1 = arith.constant 0 : i32
    %c0_i32_2 = arith.constant 0 : i32
    return %c0_i32_1, %2 : i32, i32
  }
  func.func @transform_6(%arg0: i32, %arg1: memref<1xi32, #tpu.memory_space<smem>>, %arg2: memref<3xi32, #tpu.memory_space<smem>>) -> (i32, i32) {
    %c0_i32 = arith.constant 0 : i32
    %c0_i32_0 = arith.constant 0 : i32
    return %c0_i32, %arg0 : i32, i32
  }
}

</mosaic_0001>

<llo_original>
// kernel: tpu_custom_call.1
$region0: #{tpu_custom_call.1}
  #allocation0 [shape = 'u32[]', space=smem, size = 0x4, offset = 0x4, fixed_abs, tag = 'smem constant byte address 0x4 - core index']
  #allocation1 [shape = 'u32[144,128]{1,0:T(1,128)}', space=vmem, size = 0x12000, scoped, tag = 'internal scratch']
  #allocation2 [shape = 'bf16[128,256]{1,0:T(16,128)(2,1)}', space=vmem, size = 0x10000, scoped, tag = 'scratch operand']
  #allocation3 [shape = 's32[1]{0}', space=sflag, size = 0x4, scoped, tag = 'scratch operand']
  #allocation4 [shape = 's32[1]{0}', space=sflag, size = 0x4, scoped, tag = 'scoped memory for tpu_custom_call.1']
  #allocation5 [shape = 's32[1]{0:T(128)S(6)}', space=smem, size = 0x200, scoped, tag = 'prefetched SMEM operand 0']
  #allocation6 [shape = 'u8[512]{0}', space=smem, size = 0x200, scoped, tag = 'prefetched SMEM operand 1']
  #allocation13 [shape = 's32[]', space=sflag, size = 0x4, offset = 0, fixed_abs, tag = 'sflag constant byte address 0x0 - dummy sync flag']
  %s0 = inlined_call_operand.<no memory space> [shape: s32[1], index: 0, kind: input, shape index: {}]
  %s1 = inlined_call_operand.vmem [shape: s32[3], index: 1, kind: input, shape index: {}]
  %s2 = inlined_call_operand.vmem [shape: s32[8,1], index: 2, kind: input, shape index: {}]
  %s3 = inlined_call_operand.vmem [shape: bf16[8,128], index: 3, kind: input, shape index: {}]
  %s4 = inlined_call_operand.hbm [shape: bf16[128,768], index: 4, kind: input, shape index: {}]
  %s5 = inlined_call_operand.vmem [shape: bf16[128,48], index: 5, kind: input, shape index: {}]
  %s6 = inlined_call_operand.hbm [shape: bf16[48,768], index: 6, kind: input, shape index: {}]
  %s7 = inlined_call_operand.hbm [shape: bf16[3,2,128,256], index: 7, kind: input, shape index: {}]
  %s8 = inlined_call_operand.hbm [shape: f32[8,640], index: 8, kind: output, shape index: {}]
  %s9 = sld [smem:[#allocation0]]
  $region76: #{tpu_custom_call.1} parent=0
    _
  %s11 = ssub.s32 1, %s9
  %s12 = scalar_select 0, %s11, %s9
  %13 = sst [smem:[#allocation5]] %s0
  %s14 = sshll.u32 %s1, 4
  %s15 = int_to_ptr.vmem [resolvable:$true] %s14
  %17 = dma.vmem_to_smem %s15, 16, [#allocation6], [#allocation4]
  %18 = dma.done [#allocation4], 16
  %19 = sfence
  $region1: #{tpu_custom_call.1} parent=0
    #allocation7 [shape = 'u8[131072]{0}', space=vmem, size = 0x20000, scoped, tag = 'input window, operand 4']
    #allocation8 [shape = 's32[2]{0}', space=sflag, size = 0x8, scoped, tag = 'scoped memory for tpu_custom_call.1']
    #allocation9 [shape = 's32[2]{0}', space=sflag, size = 0x8, scoped, tag = 'scoped memory for tpu_custom_call.1']
    #allocation10 [shape = 'u8[49152]{0}', space=vmem, size = 0xc000, scoped, tag = 'input window, operand 6']
    #allocation11 [shape = 's32[2]{0}', space=sflag, size = 0x8, scoped, tag = 'scoped memory for tpu_custom_call.1']
    #allocation12 [shape = 'u8[16384]{0}', space=vmem, size = 0x4000, scoped, tag = 'output window, operand 0']
    %20 = vsyncpa [#allocation8], 0
    %s21 = scalar_lea.sflag [#allocation8], 1
    %22 = vsyncpa %s21, 0
    %23 = vsyncpa [#allocation11], 0
    %s24 = scalar_lea.sflag [#allocation11], 1
    %25 = vsyncpa %s24, 0
    %26 = vsyncpa [#allocation9], 0
    %s27 = scalar_lea.sflag [#allocation9], 1
    %28 = vsyncpa %s27, 0
    loop: start=0, step=1, limit=5
    $region2: #{tpu_custom_call.1} parent=1 // loop_pre_header
      _
    $region3: #{tpu_custom_call.1} parent=1 // loop_header
      %s30 = sphi 0, %s34
      %p31 = scmp.ge.s32.totalorder %s30, 5
      %s38 = sphi 0, %s38
      %s40 = sphi 0, %s38
      %s41 = sphi 0, %s40
      %s55 = sphi 0, %s41
      %s59 = sphi 0, %s59
      %s61 = sphi 0, %s59
      %s62 = sphi 0, %s61
      %s76 = sphi 0, %s62
      %s82 = sphi 0, %s84
      %s85 = sphi 0, %s82
      %s86 = sphi 0, %s85
      %s102 = sphi 0, %s86
      %s106 = sphi 0, %s106
      %s108 = sphi 0, %s106
      %s109 = sphi 0, %s108
      %s123 = sphi 0, %s109
      %s135 = sphi 0, %s137
      %s138 = sphi 0, %s135
      %s139 = sphi 0, %s138
      %s155 = sphi 0, %s139
      %s161 = sphi 0, %s163
      %s164 = sphi 0, %s161
      %s165 = sphi 0, %s164
      %s181 = sphi 0, %s165
    $region4: #{tpu_custom_call.1} parent=1 // loop_header_branch
      %33 = sbr.rel (%p31) target = $region8
    $region5: #{tpu_custom_call.1} parent=1 // loop_body
      %s35 = ssub.s32 %s30, 1
      %s36 = ssub.s32 %s30, 2
      %s37 = sadd.s32 %s30, 1
      %s39 = sadd.s32 %s38, 1
      %p42 = scmp.eq.s32.totalorder %s30, 2
      %p43 = scmp.ne.s32.totalorder %s38, %s40
      %p44 = scmp.eq.s32.totalorder %s30, 0
      %p45 = por %p43, %p44
      %p46 = scmp.ne.s32.totalorder %s38, %s40
      %p47 = scmp.eq.s32.totalorder %s35, 2
      %p48 = por %p46, %p47
      %p49 = scmp.ne.s32.totalorder %s40, %s41
      %p50 = scmp.eq.s32.totalorder %s35, 0
      %p51 = por %p49, %p50
      %p52 = scmp.ne.s32.totalorder %s40, %s41
      %p53 = scmp.eq.s32.totalorder %s36, 2
      %p54 = por %p52, %p53
      %p56 = scmp.ne.s32.totalorder %s41, %s55
      %p57 = scmp.eq.s32.totalorder %s36, 0
      %p58 = por %p56, %p57
      %s60 = sadd.s32 %s59, 1
      %p63 = scmp.eq.s32.totalorder %s30, 2
      %p64 = scmp.ne.s32.totalorder %s59, %s61
      %p65 = scmp.eq.s32.totalorder %s30, 0
      %p66 = por %p64, %p65
      %p67 = scmp.ne.s32.totalorder %s59, %s61
      %p68 = scmp.eq.s32.totalorder %s35, 2
      %p69 = por %p67, %p68
      %p70 = scmp.ne.s32.totalorder %s61, %s62
      %p71 = scmp.eq.s32.totalorder %s35, 0
      %p72 = por %p70, %p71
      %p73 = scmp.ne.s32.totalorder %s61, %s62
      %p74 = scmp.eq.s32.totalorder %s36, 2
      %p75 = por %p73, %p74
      %p77 = scmp.ne.s32.totalorder %s62, %s76
      %p78 = scmp.eq.s32.totalorder %s36, 0
      %p79 = por %p77, %p78
      %s80 = ssub.s32 %s30, %s37
      %p81 = scmp.eq.s32.totalorder %s80, 0
      %s83 = sadd.s32 %s82, 1
      %s84 = scalar_select %p81, %s82, %s83
      %p87 = pneg %p81
      %p88 = scmp.eq.s32.totalorder %s30, 2
      %p89 = por %p87, %p88
      %p90 = scmp.ne.s32.totalorder %s82, %s85
      %p91 = scmp.eq.s32.totalorder %s30, 0
      %p92 = por %p90, %p91
      %p93 = scmp.ne.s32.totalorder %s82, %s85
      %p94 = scmp.eq.s32.totalorder %s35, 2
      %p95 = por %p93, %p94
      %p96 = scmp.ne.s32.totalorder %s85, %s86
      %p97 = scmp.eq.s32.totalorder %s35, 0
      %p98 = por %p96, %p97
      %p99 = scmp.ne.s32.totalorder %s85, %s86
      %p100 = scmp.eq.s32.totalorder %s36, 2
      %p101 = por %p99, %p100
      %p103 = scmp.ne.s32.totalorder %s86, %s102
      %p104 = scmp.eq.s32.totalorder %s36, 0
      %p105 = por %p103, %p104
      %s107 = sadd.s32 %s106, 1
      %p110 = scmp.eq.s32.totalorder %s30, 2
      %p111 = scmp.ne.s32.totalorder %s106, %s108
      %p112 = scmp.eq.s32.totalorder %s30, 0
      %p113 = por %p111, %p112
      %p114 = scmp.ne.s32.totalorder %s106, %s108
      %p115 = scmp.eq.s32.totalorder %s35, 2
      %p116 = por %p114, %p115
      %p117 = scmp.ne.s32.totalorder %s108, %s109
      %p118 = scmp.eq.s32.totalorder %s35, 0
      %p119 = por %p117, %p118
      %p120 = scmp.ne.s32.totalorder %s108, %s109
      %p121 = scmp.eq.s32.totalorder %s36, 2
      %p122 = por %p120, %p121
      %p124 = scmp.ne.s32.totalorder %s109, %s123
      %p125 = scmp.eq.s32.totalorder %s36, 0
      %p126 = por %p124, %p125
      %s127 = sld [smem:[#allocation5]]
      %p128 = scmp.gt.s32.totalorder %s127, 0
      %s129 = scalar_select %p128, %s30, 0
      %s130 = sld [smem:[#allocation5]]
      %p131 = scmp.gt.s32.totalorder %s130, 0
      %s132 = scalar_select %p131, %s37, 0
      %s133 = ssub.s32 %s129, %s132
      %p134 = scmp.eq.s32.totalorder %s133, 0
      %s136 = sadd.s32 %s135, 1
      %s137 = scalar_select %p134, %s135, %s136
      %p140 = pneg %p134
      %p141 = scmp.eq.s32.totalorder %s30, 2
      %p142 = por %p140, %p141
      %p143 = scmp.ne.s32.totalorder %s135, %s138
      %p144 = scmp.eq.s32.totalorder %s30, 0
      %p145 = por %p143, %p144
      %p146 = scmp.ne.s32.totalorder %s135, %s138
      %p147 = scmp.eq.s32.totalorder %s35, 2
      %p148 = por %p146, %p147
      %p149 = scmp.ne.s32.totalorder %s138, %s139
      %p150 = scmp.eq.s32.totalorder %s35, 0
      %p151 = por %p149, %p150
      %p152 = scmp.ne.s32.totalorder %s138, %s139
      %p153 = scmp.eq.s32.totalorder %s36, 2
      %p154 = por %p152, %p153
      %p156 = scmp.ne.s32.totalorder %s139, %s155
      %p157 = scmp.eq.s32.totalorder %s36, 0
      %p158 = por %p156, %p157
      %s159 = ssub.s32 %s30, %s37
      %p160 = scmp.eq.s32.totalorder %s159, 0
      %s162 = sadd.s32 %s161, 1
      %s163 = scalar_select %p160, %s161, %s162
      %p166 = pneg %p160
      %p167 = scmp.eq.s32.totalorder %s30, 2
      %p168 = por %p166, %p167
      %p169 = scmp.ne.s32.totalorder %s161, %s164
      %p170 = scmp.eq.s32.totalorder %s30, 0
      %p171 = por %p169, %p170
      %p172 = scmp.ne.s32.totalorder %s161, %s164
      %p173 = scmp.eq.s32.totalorder %s35, 2
      %p174 = por %p172, %p173
      %p175 = scmp.ne.s32.totalorder %s164, %s165
      %p176 = scmp.eq.s32.totalorder %s35, 0
      %p177 = por %p175, %p176
      %p178 = scmp.ne.s32.totalorder %s164, %s165
      %p179 = scmp.eq.s32.totalorder %s36, 2
      %p180 = por %p178, %p179
      %p182 = scmp.ne.s32.totalorder %s165, %s181
      %p183 = scmp.eq.s32.totalorder %s36, 0
      %p184 = por %p182, %p183
      %p185 = scmp.le.s32.totalorder 1, %s30
      %p186 = scmp.lt.s32.totalorder %s30, 4
      %p187 = pnand %p185, %p186
      %p188 = pneg %p187
      // Predicated region
      $region9: #{tpu_custom_call.1} parent=5 // pred_check
        _
      $region10: #{tpu_custom_call.1} parent=5 // pred_check_branch
        %190 = sbr.rel (%p187) target = $region12
      $region11: #{tpu_custom_call.1} parent=5 // pred_region
        %s191 = ssub.s32 %s30, 1
        // Predicated region
        $region13: #{tpu_custom_call.1} parent=11 // pred_check
          %p192 = pneg %p51
        $region14: #{tpu_custom_call.1} parent=11 // pred_check_branch
          %194 = sbr.rel (%p192) target = $region16
        $region15: #{tpu_custom_call.1} parent=11 // pred_region
          _
        $region16: #{tpu_custom_call.1} parent=11 // pred_fallthru
          _
        // Predicated region
        $region17: #{tpu_custom_call.1} parent=11 // pred_check
          %p195 = pneg %p72
        $region18: #{tpu_custom_call.1} parent=11 // pred_check_branch
          %197 = sbr.rel (%p195) target = $region20
        $region19: #{tpu_custom_call.1} parent=11 // pred_region
          _
        $region20: #{tpu_custom_call.1} parent=11 // pred_fallthru
          _
        // Predicated region
        $region21: #{tpu_custom_call.1} parent=11 // pred_check
          %p198 = pneg %p119
        $region22: #{tpu_custom_call.1} parent=11 // pred_check_branch
          %200 = sbr.rel (%p198) target = $region24
        $region23: #{tpu_custom_call.1} parent=11 // pred_region
          _
        $region24: #{tpu_custom_call.1} parent=11 // pred_fallthru
          _
      $region12: #{tpu_custom_call.1} parent=5 // pred_fallthru
        _
      %p201 = scmp.lt.s32.totalorder %s30, 3
      // Predicated region
      $region25: #{tpu_custom_call.1} parent=5 // pred_check
        %p202 = pneg %p201
      $region26: #{tpu_custom_call.1} parent=5 // pred_check_branch
        %204 = sbr.rel (%p202) target = $region28
      $region27: #{tpu_custom_call.1} parent=5 // pred_region
        // Predicated region
        $region29: #{tpu_custom_call.1} parent=27 // pred_check
          %p205 = pneg %p92
        $region30: #{tpu_custom_call.1} parent=27 // pred_check_branch
          %207 = sbr.rel (%p205) target = $region32
        $region31: #{tpu_custom_call.1} parent=27 // pred_region
          %s208 = sand.u32 %s82, 1
          %s209 = scalar_lea.sflag [#allocation8], %s208
          %s210 = sand.u32 %s82, 1
          %s211 = smul.addr %s210, 128
          %s212 = scalar_lea.vmem [#allocation7], %s211
          %s213 = smul.u32 2, %s30
          %s215 = ssub.s32 2048, 2048
          %216 = vsyncadd %s209, %s215
          %s217 = smul.addr %s213, 64
          %s218 = scalar_lea.hbm %s4, %s217
          %s219 = sshll.u32 %s212, 4
          %s220 = int_to_ptr.vmem [resolvable:$true] %s219
          %225 = dma.hbm_to_vmem [thread:$0]  %s218, 2048, %s220, %s209, 384, 128, 8
        $region32: #{tpu_custom_call.1} parent=27 // pred_fallthru
          _
        // Predicated region
        $region33: #{tpu_custom_call.1} parent=27 // pred_check
          %p226 = pneg %p145
        $region34: #{tpu_custom_call.1} parent=27 // pred_check_branch
          %228 = sbr.rel (%p226) target = $region36
        $region35: #{tpu_custom_call.1} parent=27 // pred_region
          %s229 = sand.u32 %s135, 1
          %s230 = scalar_lea.sflag [#allocation11], %s229
          %s231 = sand.u32 %s135, 1
          %s232 = smul.addr %s231, 48
          %s233 = scalar_lea.vmem [#allocation10], %s232
          %s234 = sld [smem:[#allocation5]]
          %p235 = scmp.gt.s32.totalorder %s234, 0
          %s236 = scalar_select %p235, %s30, 0
          %s237 = smul.u32 2, %s236
          %s239 = ssub.s32 768, 768
          %240 = vsyncadd %s230, %s239
          %s241 = smul.addr %s237, 64
          %s242 = scalar_lea.hbm %s6, %s241
          %s243 = sshll.u32 %s233, 4
          %s244 = int_to_ptr.vmem [resolvable:$true] %s243
          %249 = dma.hbm_to_vmem [thread:$0]  %s242, 768, %s244, %s230, 384, 128, 8
        $region36: #{tpu_custom_call.1} parent=27 // pred_fallthru
          _
      $region28: #{tpu_custom_call.1} parent=5 // pred_fallthru
        _
      %p250 = scmp.le.s32.totalorder 1, %s30
      %p251 = scmp.lt.s32.totalorder %s30, 4
      %p252 = pnand %p250, %p251
      %p253 = pneg %p252
      // Predicated region
      $region37: #{tpu_custom_call.1} parent=5 // pred_check
        _
      $region38: #{tpu_custom_call.1} parent=5 // pred_check_branch
        %255 = sbr.rel (%p252) target = $region40
      $region39: #{tpu_custom_call.1} parent=5 // pred_region
        %s256 = ssub.s32 %s30, 1
        %s257 = sand.u32 %s85, 1
        %s258 = scalar_lea.sflag [#allocation8], %s257
        %s259 = sand.u32 %s85, 1
        %s260 = smul.addr %s259, 128
        %s261 = scalar_lea.vmem [#allocation7], %s260
        // Predicated region
        $region41: #{tpu_custom_call.1} parent=39 // pred_check
          %p262 = pneg %p98
        $region42: #{tpu_custom_call.1} parent=39 // pred_check_branch
          %264 = sbr.rel (%p262) target = $region44
        $region43: #{tpu_custom_call.1} parent=39 // pred_region
          %265 = dma.done %s258, 2048
        $region44: #{tpu_custom_call.1} parent=39 // pred_fallthru
          _
        %s266 = sand.u32 %s138, 1
        %s267 = scalar_lea.sflag [#allocation11], %s266
        %s268 = sand.u32 %s138, 1
        %s269 = smul.addr %s268, 48
        %s270 = scalar_lea.vmem [#allocation10], %s269
        // Predicated region
        $region45: #{tpu_custom_call.1} parent=39 // pred_check
          %p271 = pneg %p151
        $region46: #{tpu_custom_call.1} parent=39 // pred_check_branch
          %273 = sbr.rel (%p271) target = $region48
        $region47: #{tpu_custom_call.1} parent=39 // pred_region
          %274 = dma.done %s267, 768
        $region48: #{tpu_custom_call.1} parent=39 // pred_fallthru
          _
        %p275 = pneg %p51
        %p276 = pneg %p48
        %p277 = pneg %p72
        %p278 = pneg %p69
        %s279 = sand.u32 %s85, 1
        %s280 = scalar_lea.sflag [#allocation8], %s279
        %s281 = sand.u32 %s85, 1
        %s282 = smul.addr %s281, 128
        %s283 = scalar_lea.vmem [#allocation7], %s282
        %p284 = pneg %p98
        %p285 = pneg %p95
        %p286 = pneg %p119
        %p287 = pneg %p116
        %s288 = sand.u32 %s138, 1
        %s289 = scalar_lea.sflag [#allocation11], %s288
        %s290 = sand.u32 %s138, 1
        %s291 = smul.addr %s290, 48
        %s292 = scalar_lea.vmem [#allocation10], %s291
        %p293 = pneg %p151
        %p294 = pneg %p148
        %p295 = pneg %p177
        %p296 = pneg %p174
        %s297 = sand.u32 %s164, 1
        %s298 = scalar_lea.sflag [#allocation9], %s297
        %s299 = sand.u32 %s164, 1
        %s300 = smul.addr %s299, 16
        %s301 = scalar_lea.vmem [#allocation12], %s300
        %s302 = smul.u32 2, %s35
        %s303 = sld [smem:[#allocation5]]
        %p304 = scmp.gt.s32.totalorder %s303, 0
        %s305 = scalar_select %p304, %s35, 0
        %s306 = smul.u32 2, %s305
        %s307 = smul.u32 2, %s35
        %s308 = ssub.s32 5, %s307
        %p309 = scmp.lt.s32.totalorder %s308, 2
        %s310 = scalar_select %p309, %s308, 2
        %s311 = smul.u32 128, %s310
        %s313 = sld [smem:[#allocation5]]
        %v314 = vld [vmem:[%s3] sm:$0xf]
        %v315 = vld [vmem:[%s261] sm:$0xff]
        %v316 = vld [vmem:[%s261 + $0x8] sm:$0xff]
        %v317 = vld [vmem:[%s261 + $0x10] sm:$0xff]
        %v318 = vld [vmem:[%s261 + $0x18] sm:$0xff]
        %v319 = vld [vmem:[%s261 + $0x20] sm:$0xff]
        %v320 = vld [vmem:[%s261 + $0x28] sm:$0xff]
        %v321 = vld [vmem:[%s261 + $0x30] sm:$0xff]
        %v322 = vld [vmem:[%s261 + $0x38] sm:$0xff]
        %v323 = vld [vmem:[%s261 + $0x40] sm:$0xff]
        %v324 = vld [vmem:[%s261 + $0x48] sm:$0xff]
        %v325 = vld [vmem:[%s261 + $0x50] sm:$0xff]
        %v326 = vld [vmem:[%s261 + $0x58] sm:$0xff]
        %v327 = vld [vmem:[%s261 + $0x60] sm:$0xff]
        %v328 = vld [vmem:[%s261 + $0x68] sm:$0xff]
        %v329 = vld [vmem:[%s261 + $0x70] sm:$0xff]
        %v330 = vld [vmem:[%s261 + $0x78] sm:$0xff]
        %v347 = vunpack.c.l.b16 %v315
        %v348 = vunpack.c.h.b16 %v315
        %v349 = vunpack.c.l.b16 %v316
        %v350 = vunpack.c.h.b16 %v316
        %v351 = vunpack.c.l.b16 %v317
        %v352 = vunpack.c.h.b16 %v317
        %v353 = vunpack.c.l.b16 %v318
        %v354 = vunpack.c.h.b16 %v318
        %v355 = vunpack.c.l.b16 %v319
        %v356 = vunpack.c.h.b16 %v319
        %v357 = vunpack.c.l.b16 %v320
        %v358 = vunpack.c.h.b16 %v320
        %v359 = vunpack.c.l.b16 %v321
        %v360 = vunpack.c.h.b16 %v321
        %v361 = vunpack.c.l.b16 %v322
        %v362 = vunpack.c.h.b16 %v322
        %v363 = vunpack.c.l.b16 %v323
        %v364 = vunpack.c.h.b16 %v323
        %v365 = vunpack.c.l.b16 %v324
        %v366 = vunpack.c.h.b16 %v324
        %v367 = vunpack.c.l.b16 %v325
        %v368 = vunpack.c.h.b16 %v325
        %v369 = vunpack.c.l.b16 %v326
        %v370 = vunpack.c.h.b16 %v326
        %v371 = vunpack.c.l.b16 %v327
        %v372 = vunpack.c.h.b16 %v327
        %v373 = vunpack.c.l.b16 %v328
        %v374 = vunpack.c.h.b16 %v328
        %v375 = vunpack.c.l.b16 %v329
        %v376 = vunpack.c.h.b16 %v329
        %v377 = vunpack.c.l.b16 %v330
        %v378 = vunpack.c.h.b16 %v330
        %v379 = vpack.c.b16 %v349, %v347
        %v380 = vpack.c.b16 %v350, %v348
        %v381 = vpack.c.b16 %v353, %v351
        %v382 = vpack.c.b16 %v354, %v352
        %v383 = vpack.c.b16 %v357, %v355
        %v384 = vpack.c.b16 %v358, %v356
        %v385 = vpack.c.b16 %v361, %v359
        %v386 = vpack.c.b16 %v362, %v360
        %v387 = vpack.c.b16 %v365, %v363
        %v388 = vpack.c.b16 %v366, %v364
        %v389 = vpack.c.b16 %v369, %v367
        %v390 = vpack.c.b16 %v370, %v368
        %v391 = vpack.c.b16 %v373, %v371
        %v392 = vpack.c.b16 %v374, %v372
        %v393 = vpack.c.b16 %v377, %v375
        %v394 = vpack.c.b16 %v378, %v376
        %411 = vmatprep.subr.bf16.mxu0 %v380
        %412 = vmatpush1.bf16.msra.mxu0 %v379
        %413 = vmatprep.subr.bf16.mxu0 %v382
        %414 = vmatpush1.bf16.msra.mxu0 %v381
        %415 = vmatprep.subr.bf16.mxu0 %v384
        %416 = vmatpush1.bf16.msra.mxu0 %v383
        %417 = vmatprep.subr.bf16.mxu0 %v386
        %418 = vmatpush1.bf16.msra.mxu0 %v385
        %419 = vmatprep.subr.bf16.mxu0 %v388
        %420 = vmatpush1.bf16.msra.mxu0 %v387
        %421 = vmatprep.subr.bf16.mxu0 %v390
        %422 = vmatpush1.bf16.msra.mxu0 %v389
        %423 = vmatprep.subr.bf16.mxu0 %v392
        %424 = vmatpush1.bf16.msra.mxu0 %v391
        %425 = vmatprep.subr.bf16.mxu0 %v394
        %426 = vmatpush1.bf16.msra.mxu0 %v393
        %427 = vmatprep.subr.bf16.mxu0 0
        %428 = vmatpush1.bf16.msra.mxu0 0
        %429 = vmatprep.subr.bf16.mxu0 0
        %430 = vmatpush1.bf16.msra.mxu0 0
        %431 = vmatprep.subr.bf16.mxu0 0
        %432 = vmatpush1.bf16.msra.mxu0 0
        %433 = vmatprep.subr.bf16.mxu0 0
        %434 = vmatpush1.bf16.msra.mxu0 0
        %435 = vmatprep.subr.bf16.mxu0 0
        %436 = vmatpush1.bf16.msra.mxu0 0
        %437 = vmatprep.subr.bf16.mxu0 0
        %438 = vmatpush1.bf16.msra.mxu0 0
        %439 = vmatprep.subr.bf16.mxu0 0
        %440 = vmatpush1.bf16.msra.mxu0 0
        %441 = vmatprep.subr.bf16.mxu0 0
        %442 = vmatpush1.bf16.msra.mxu0 0
        %443 = vmatprep.mubr.bf16.mxu0 0
        %444 = vmatmul.mubr.bf16.gmra.mrb[0].mxu0 %v314
        %v445 = vpop.f32.mrb[0].mxu0
        %v446 = vadd.f32 0.0, %v445
        %v447 = vpop.f32.mrb[0].mxu0
        %v448 = vadd.f32 0.0, %v447
        %v449 = vpop.f32.mrb[0].mxu0
        %v450 = vpop.f32.mrb[0].mxu0
        %451 = vdwg.mxu0
        %s452 = smul.u32 %s35, 256
        %v453 = vlaneseq
        %v454 = vand.u32 %v453, 127
        %v455 = vadd.s32 %v454, 128
        %v456 = vstv %s452
        %v457 = vadd.s32 %v456, %v454
        %v458 = vadd.s32 %v456, %v455
        %vm459 = vcmp.ge.s32.totalorder %v457, 384
        %vm460 = vcmp.ge.s32.totalorder %v458, 384
        %vm461 = vcmp.lt.s32.totalorder %v457, 640
        %vm462 = vcmp.lt.s32.totalorder %v458, 640
        %vm463 = vmand %vm459, %vm461
        %vm464 = vmand %vm460, %vm462
        %v465 = vsel %vm463, 1, 0
        %v466 = vsel %vm464, 1, 0
        %vm467 = vcmp.eq.s32.totalorder %v465, 1
        %vm468 = vcmp.eq.s32.totalorder %v466, 1
        %v469 = vsel %vm467, -inf, %v446
        %v470 = vsel %vm468, -inf, %v448
        %471 = vst [vmem:[%s301] sm:$0xff] %v469
        %472 = vst [vmem:[%s301 + $0x8] sm:$0xff] %v470
        %p473 = scmp.ge.s32.totalorder %s35, 1
        %p474 = scmp.le.s32.totalorder %s35, 2
        %p475 = pnand %p473, %p474
        %p476 = pneg %p475
        // Predicated region
        $region49: #{tpu_custom_call.1} parent=39 // pred_check
          _
        $region50: #{tpu_custom_call.1} parent=39 // pred_check_branch
          %478 = sbr.rel (%p475) target = $region52
        $region51: #{tpu_custom_call.1} parent=39 // pred_region
          %s479 = ssub.s32 %s35, 1
          // While loop
          $region53: #{tpu_custom_call.1} parent=51 // loop_pre_header
            _
          $region54: #{tpu_custom_call.1} parent=51 // loop_header
            %s481 = sphi 0, %s483
            %p482 = scmp.ge.s32.totalorder %s481, %s313
          $region55: #{tpu_custom_call.1} parent=51 // loop_header_branch
            %485 = sbr.rel (%p482) target = $region59
          $region56: #{tpu_custom_call.1} parent=51 // loop_body
            #allocation14 [shape = 'u32[9]{0}', space=smem, size = 0x24, scoped, tag = 'DMA stride descriptor']
            %s486 = sld [smem:[#allocation6 + %s481]]
            %s487 = smul.u32 %s479, 32
            %s488 = smul.u32 %s486, 64
            %s489 = sadd.s32 %s487, %s488
            %s490 = smul.addr %s489, 64
            %s491 = scalar_lea.hbm %s7, %s490
            %s493 = sshll.u32 1, 14
            %s494 = sxor.u32 4294967295, %s493
            %s496 = sld [smem:[#allocation0]]
            %s497 = sadd.s32 2, %s496
            %s499 = sshll.u32 7, 26
            %s500 = sxor.u32 4294967295, %s499
            %s501 = sand.u32 0, %s500
            %s502 = sshll.u32 %s497, 26
            %s503 = sor.u32 %s501, %s502
            %s504 = sshll.u32 [#allocation2], 4
            %s505 = int_to_ptr.vmem [resolvable:$true] %s504
            %508 = sst [smem:[#allocation14]] 256
            %s509 = scalar_lea.smem [#allocation14], 1
            %510 = sst [smem:[%s509]] 256
            %s511 = scalar_lea.smem [#allocation14], 2
            %512 = sst [smem:[%s511]] 2
            %s513 = scalar_lea.smem [#allocation14], 3
            %514 = sst [smem:[%s513]] 64
            %s515 = scalar_lea.smem [#allocation14], 4
            %516 = sst [smem:[%s515]] 128
            %s517 = scalar_lea.smem [#allocation14], 5
            %518 = sst [smem:[%s517]] 2
            %s519 = scalar_lea.smem [#allocation14], 6
            %520 = sst [smem:[%s519]] 128
            %s521 = scalar_lea.smem [#allocation14], 7
            %522 = sst [smem:[%s521]] 64
            %s523 = scalar_lea.smem [#allocation14], 8
            %524 = sst [smem:[%s523]] 4
            %526 = dma.general %s491, 2048, %s505, [#allocation3], [#allocation13], [#allocation14], %s503, 0
            %s527 = smul.u32 4, 16
            %s528 = smul.u32 %s527, 2
            %s529 = sshll.u32 %s528, 4
            %530 = dma.done [#allocation3], %s529
            %v531 = vld [vmem:[#allocation2] sm:$0xff]
            %v532 = vld [vmem:[#allocation2 + $0x8] sm:$0xff]
            %v533 = vld [vmem:[#allocation2 + $0x10] sm:$0xff]
            %v534 = vld [vmem:[#allocation2 + $0x18] sm:$0xff]
            %v535 = vld [vmem:[#allocation2 + $0x20] sm:$0xff]
            %v536 = vld [vmem:[#allocation2 + $0x28] sm:$0xff]
            %v537 = vld [vmem:[#allocation2 + $0x30] sm:$0xff]
            %v538 = vld [vmem:[#allocation2 + $0x38] sm:$0xff]
            %v539 = vld [vmem:[#allocation2 + $0x40] sm:$0xff]
            %v540 = vld [vmem:[#allocation2 + $0x48] sm:$0xff]
            %v541 = vld [vmem:[#allocation2 + $0x50] sm:$0xff]
            %v542 = vld [vmem:[#allocation2 + $0x58] sm:$0xff]
            %v543 = vld [vmem:[#allocation2 + $0x60] sm:$0xff]
            %v544 = vld [vmem:[#allocation2 + $0x68] sm:$0xff]
            %v545 = vld [vmem:[#allocation2 + $0x70] sm:$0xff]
            %v546 = vld [vmem:[#allocation2 + $0x78] sm:$0xff]
            %547 = vmatprep.subr.bf16.mxu0 %v532
            %548 = vmatpush1.bf16.msra.mxu0 %v531
            %549 = vmatprep.subr.bf16.mxu0 %v534
            %550 = vmatpush1.bf16.msra.mxu0 %v533
            %551 = vmatprep.subr.bf16.mxu0 %v536
            %552 = vmatpush1.bf16.msra.mxu0 %v535
            %553 = vmatprep.subr.bf16.mxu0 %v538
            %554 = vmatpush1.bf16.msra.mxu0 %v537
            %555 = vmatprep.subr.bf16.mxu0 %v540
            %556 = vmatpush1.bf16.msra.mxu0 %v539
            %557 = vmatprep.subr.bf16.mxu0 %v542
            %558 = vmatpush1.bf16.msra.mxu0 %v541
            %559 = vmatprep.subr.bf16.mxu0 %v544
            %560 = vmatpush1.bf16.msra.mxu0 %v543
            %561 = vmatprep.subr.bf16.mxu0 %v546
            %562 = vmatpush1.bf16.msra.mxu0 %v545
            %563 = vmatprep.subr.bf16.mxu0 0
            %564 = vmatpush1.bf16.msra.mxu0 0
            %565 = vmatprep.subr.bf16.mxu0 0
            %566 = vmatpush1.bf16.msra.mxu0 0
            %567 = vmatprep.subr.bf16.mxu0 0
            %568 = vmatpush1.bf16.msra.mxu0 0
            %569 = vmatprep.subr.bf16.mxu0 0
            %570 = vmatpush1.bf16.msra.mxu0 0
            %571 = vmatprep.subr.bf16.mxu0 0
            %572 = vmatpush1.bf16.msra.mxu0 0
            %573 = vmatprep.subr.bf16.mxu0 0
            %574 = vmatpush1.bf16.msra.mxu0 0
            %575 = vmatprep.subr.bf16.mxu0 0
            %576 = vmatpush1.bf16.msra.mxu0 0
            %577 = vmatprep.subr.bf16.mxu0 0
            %578 = vmatpush1.bf16.msra.mxu0 0
            %579 = vmatprep.mubr.bf16.mxu0 0
            %580 = vmatmul.mubr.bf16.gmra.mrb[0].mxu0 %v314
            %v581 = vpop.f32.mrb[0].mxu0
            %v582 = vadd.f32 0.0, %v581
            %v583 = vpop.f32.mrb[0].mxu0
            %v584 = vadd.f32 0.0, %v583
            %v585 = vpop.f32.mrb[0].mxu0
            %v586 = vpop.f32.mrb[0].mxu0
            %587 = vdwg.mxu0
            %vm588 = vcmp.ne.f32.partialorder %v582, %v582
            %vm589 = vcmp.ne.f32.partialorder %v584, %v584
            %v590 = vsel %vm588, -inf, %v582
            %v591 = vsel %vm589, -inf, %v584
            %v592 = vld [vmem:[%s2] sm:$0xff]
            %v593 = vstv %s486
            %vm594 = vcmp.eq.s32.totalorder %v592, %v593
            %v595 = vsel %vm594, 1, 0
            %596 = vset.pattern.permute.xlu0 0
            %597 = vperm.xlu0 %596, %v595
            %v598 = vpop.permute.xlu0 %597
            %vm599 = vcmp.eq.s32.totalorder %v598, 1
            %vm600 = vmand %vm599, %vm467
            %vm601 = vmand %vm599, %vm468
            %v602 = vld [vmem:[%s301] sm:$0xff]
            %v603 = vld [vmem:[%s301 + $0x8] sm:$0xff]
            %v604 = vsel %vm600, %v590, %v602
            %v605 = vsel %vm601, %v591, %v603
            %606 = vst [vmem:[%s301] sm:$0xff] %v604
            %607 = vst [vmem:[%s301 + $0x8] sm:$0xff] %v605
          $region57: #{tpu_custom_call.1} parent=51 // loop_footer
            %s483 = sadd.s32 %s481, 1
          $region58: #{tpu_custom_call.1} parent=51 // loop_footer_branch
            %480 = sbr.rel target = $region54
          $region59: #{tpu_custom_call.1} parent=51 // loop_exit
            _
        $region52: #{tpu_custom_call.1} parent=39 // pred_fallthru
          _
        %p608 = scmp.gt.s32.totalorder %s313, 0
        // Predicated region
        $region60: #{tpu_custom_call.1} parent=39 // pred_check
          %p609 = pneg %p608
        $region61: #{tpu_custom_call.1} parent=39 // pred_check_branch
          %611 = sbr.rel (%p609) target = $region63
        $region62: #{tpu_custom_call.1} parent=39 // pred_region
          %v612 = vld [vmem:[%s5] sm:$0xf]
          %v613 = vld [vmem:[%s5 + $0x4] sm:$0xf]
          %v614 = vld [vmem:[%s5 + $0x8] sm:$0xf]
          %v615 = vld [vmem:[%s5 + $0xc] sm:$0xf]
          %v616 = vld [vmem:[%s5 + $0x10] sm:$0xf]
          %v617 = vld [vmem:[%s5 + $0x14] sm:$0xf]
          %v618 = vld [vmem:[%s5 + $0x18] sm:$0xf]
          %v619 = vld [vmem:[%s5 + $0x1c] sm:$0xf]
          %v620 = vld [vmem:[%s5 + $0x20] sm:$0xf]
          %v621 = vld [vmem:[%s5 + $0x24] sm:$0xf]
          %v622 = vld [vmem:[%s5 + $0x28] sm:$0xf]
          %v623 = vld [vmem:[%s5 + $0x2c] sm:$0xf]
          %v624 = vld [vmem:[%s5 + $0x30] sm:$0xf]
          %v625 = vld [vmem:[%s5 + $0x34] sm:$0xf]
          %v626 = vld [vmem:[%s5 + $0x38] sm:$0xf]
          %v627 = vld [vmem:[%s5 + $0x3c] sm:$0xf]
          %v644 = vunpack.c.l.b16 %v612
          %v645 = vunpack.c.l.b16 %v613
          %v646 = vunpack.c.l.b16 %v614
          %v647 = vunpack.c.l.b16 %v615
          %v648 = vunpack.c.l.b16 %v616
          %v649 = vunpack.c.l.b16 %v617
          %v650 = vunpack.c.l.b16 %v618
          %v651 = vunpack.c.l.b16 %v619
          %v652 = vunpack.c.l.b16 %v620
          %v653 = vunpack.c.l.b16 %v621
          %v654 = vunpack.c.l.b16 %v622
          %v655 = vunpack.c.l.b16 %v623
          %v656 = vunpack.c.l.b16 %v624
          %v657 = vunpack.c.l.b16 %v625
          %v658 = vunpack.c.l.b16 %v626
          %v659 = vunpack.c.l.b16 %v627
          %v660 = vpack.c.b16 %v645, %v644
          %v661 = vpack.c.b16 %v647, %v646
          %v662 = vpack.c.b16 %v649, %v648
          %v663 = vpack.c.b16 %v651, %v650
          %v664 = vpack.c.b16 %v653, %v652
          %v665 = vpack.c.b16 %v655, %v654
          %v666 = vpack.c.b16 %v657, %v656
          %v667 = vpack.c.b16 %v659, %v658
          %676 = vmatprep.subr.bf16.mxu0 0
          %677 = vmatpush1.bf16.msra.mxu0 %v660
          %678 = vmatprep.subr.bf16.mxu0 0
          %679 = vmatpush1.bf16.msra.mxu0 %v661
          %680 = vmatprep.subr.bf16.mxu0 0
          %681 = vmatpush1.bf16.msra.mxu0 %v662
          %682 = vmatprep.subr.bf16.mxu0 0
          %683 = vmatpush1.bf16.msra.mxu0 %v663
          %684 = vmatprep.subr.bf16.mxu0 0
          %685 = vmatpush1.bf16.msra.mxu0 %v664
          %686 = vmatprep.subr.bf16.mxu0 0
          %687 = vmatpush1.bf16.msra.mxu0 %v665
          %688 = vmatprep.subr.bf16.mxu0 0
          %689 = vmatpush1.bf16.msra.mxu0 %v666
          %690 = vmatprep.subr.bf16.mxu0 0
          %691 = vmatpush1.bf16.msra.mxu0 %v667
          %692 = vmatprep.subr.bf16.mxu0 0
          %693 = vmatpush1.bf16.msra.mxu0 0
          %694 = vmatprep.subr.bf16.mxu0 0
          %695 = vmatpush1.bf16.msra.mxu0 0
          %696 = vmatprep.subr.bf16.mxu0 0
          %697 = vmatpush1.bf16.msra.mxu0 0
          %698 = vmatprep.subr.bf16.mxu0 0
          %699 = vmatpush1.bf16.msra.mxu0 0
          %700 = vmatprep.subr.bf16.mxu0 0
          %701 = vmatpush1.bf16.msra.mxu0 0
          %702 = vmatprep.subr.bf16.mxu0 0
          %703 = vmatpush1.bf16.msra.mxu0 0
          %704 = vmatprep.subr.bf16.mxu0 0
          %705 = vmatpush1.bf16.msra.mxu0 0
          %706 = vmatprep.subr.bf16.mxu0 0
          %707 = vmatpush1.bf16.msra.mxu0 0
          %708 = vmatprep.mubr.bf16.mxu0 0
          %709 = vmatmul.mubr.bf16.gmra.mrb[0].mxu0 %v314
          %v710 = vpop.f32.mrb[0].mxu0
          %v711 = vadd.f32 0.0, %v710
          %v712 = vpop.f32.mrb[0].mxu0
          %v713 = vpop.f32.mrb[0].mxu0
          %v714 = vpop.f32.mrb[0].mxu0
          %715 = vdwg.mxu0
          %v716 = vld [vmem:[%s2] sm:$0xff]
          %v717 = vmul.u32 %v716, 16
          %718 = vset.pattern.permute.xlu0 0
          %719 = vperm.xlu0 %718, %v717
          %v720 = vpop.permute.xlu0 %719
          %vm721 = vcmp.ge.s32.totalorder %v454, %v720
          %v722 = vadd.s32 %v717, 16
          %723 = vset.pattern.permute.xlu0 0
          %724 = vperm.xlu0 %723, %v722
          %v725 = vpop.permute.xlu0 %724
          %vm726 = vcmp.lt.s32.totalorder %v454, %v725
          %vm727 = vmand %vm721, %vm726
          %v728 = vsel %vm727, %v711, 0.0
          %v729 = vpack.c.bf16 %v728, %v728
          %v730 = vld [vmem:[%s270] sm:$0xff]
          %v731 = vld [vmem:[%s270 + $0x8] sm:$0xff]
          %v732 = vld [vmem:[%s270 + $0x10] sm:$0xff]
          %v733 = vld [vmem:[%s270 + $0x18] sm:$0xff]
          %v734 = vld [vmem:[%s270 + $0x20] sm:$0xff]
          %v735 = vld [vmem:[%s270 + $0x28] sm:$0xff]
          %v742 = vunpack.c.l.b16 %v730
          %v743 = vunpack.c.h.b16 %v730
          %v744 = vunpack.c.l.b16 %v731
          %v745 = vunpack.c.h.b16 %v731
          %v746 = vunpack.c.l.b16 %v732
          %v747 = vunpack.c.h.b16 %v732
          %v748 = vunpack.c.l.b16 %v733
          %v749 = vunpack.c.h.b16 %v733
          %v750 = vunpack.c.l.b16 %v734
          %v751 = vunpack.c.h.b16 %v734
          %v752 = vunpack.c.l.b16 %v735
          %v753 = vunpack.c.h.b16 %v735
          %v754 = vpack.c.b16 %v744, %v742
          %v755 = vpack.c.b16 %v745, %v743
          %v756 = vpack.c.b16 %v748, %v746
          %v757 = vpack.c.b16 %v749, %v747
          %v758 = vpack.c.b16 %v752, %v750
          %v759 = vpack.c.b16 %v753, %v751
          %vm766 = vcmask 392192
          %v768 = vsel %vm766, %v729, 0
          %770 = vmatprep.subr.bf16.mxu0 %v755
          %771 = vmatpush1.bf16.msra.mxu0 %v754
          %772 = vmatprep.subr.bf16.mxu0 %v757
          %773 = vmatpush1.bf16.msra.mxu0 %v756
          %774 = vmatprep.subr.bf16.mxu0 %v759
          %775 = vmatpush1.bf16.msra.mxu0 %v758
          %776 = vmatprep.subr.bf16.mxu0 0
          %777 = vmatpush1.bf16.msra.mxu0 0
          %778 = vmatprep.subr.bf16.mxu0 0
          %779 = vmatpush1.bf16.msra.mxu0 0
          %780 = vmatprep.subr.bf16.mxu0 0
          %781 = vmatpush1.bf16.msra.mxu0 0
          %782 = vmatprep.subr.bf16.mxu0 0
          %783 = vmatpush1.bf16.msra.mxu0 0
          %784 = vmatprep.subr.bf16.mxu0 0
          %785 = vmatpush1.bf16.msra.mxu0 0
          %786 = vmatprep.subr.bf16.mxu0 0
          %787 = vmatpush1.bf16.msra.mxu0 0
          %788 = vmatprep.subr.bf16.mxu0 0
          %789 = vmatpush1.bf16.msra.mxu0 0
          %790 = vmatprep.subr.bf16.mxu0 0
          %791 = vmatpush1.bf16.msra.mxu0 0
          %792 = vmatprep.subr.bf16.mxu0 0
          %793 = vmatpush1.bf16.msra.mxu0 0
          %794 = vmatprep.subr.bf16.mxu0 0
          %795 = vmatpush1.bf16.msra.mxu0 0
          %796 = vmatprep.subr.bf16.mxu0 0
          %797 = vmatpush1.bf16.msra.mxu0 0
          %798 = vmatprep.subr.bf16.mxu0 0
          %799 = vmatpush1.bf16.msra.mxu0 0
          %800 = vmatprep.subr.bf16.mxu0 0
          %801 = vmatpush1.bf16.msra.mxu0 0
          %802 = vmatprep.mubr.bf16.mxu0 0
          %803 = vmatmul.mubr.bf16.gmra.mrb[0].mxu0 %v768
          %v804 = vpop.f32.mrb[0].mxu0
          %v805 = vadd.f32 0.0, %v804
          %v806 = vpop.f32.mrb[0].mxu0
          %v807 = vadd.f32 0.0, %v806
          %v808 = vpop.f32.mrb[0].mxu0
          %v809 = vpop.f32.mrb[0].mxu0
          %810 = vdwg.mxu0
          %v811 = vld [vmem:[%s301] sm:$0xff]
          %v812 = vld [vmem:[%s301 + $0x8] sm:$0xff]
          %v813 = vadd.f32 %v811, %v805
          %v814 = vadd.f32 %v812, %v807
          %815 = vst [vmem:[%s301] sm:$0xff] %v813
          %816 = vst [vmem:[%s301 + $0x8] sm:$0xff] %v814
        $region63: #{tpu_custom_call.1} parent=39 // pred_fallthru
          _
        %v817 = vld [vmem:[%s301] sm:$0xff]
        %v818 = vld [vmem:[%s301 + $0x8] sm:$0xff]
        %v819 = vmul.f32 %v817, 0.033333335
        %v820 = vmul.f32 %v818, 0.033333335
        %v821 = vtanh.pop %v819
        %v822 = vtanh.pop %v820
        %v823 = vmul.f32 %v821, 30.0
        %v824 = vmul.f32 %v822, 30.0
        %v825 = vmul.f32 %v823, 0.5
        %v826 = vmul.f32 %v824, 0.5
        %827 = vst [vmem:[%s301] sm:$0xff] %v825
        %828 = vst [vmem:[%s301 + $0x8] sm:$0xff] %v826
        %s829 = sand.u32 %s164, 1
        %s830 = scalar_lea.sflag [#allocation9], %s829
        %s831 = sand.u32 %s164, 1
        %s832 = smul.addr %s831, 16
        %s833 = scalar_lea.vmem [#allocation12], %s832
        // Predicated region
        $region64: #{tpu_custom_call.1} parent=39 // pred_check
          %p834 = pneg %p174
        $region65: #{tpu_custom_call.1} parent=39 // pred_check_branch
          %836 = sbr.rel (%p834) target = $region67
        $region66: #{tpu_custom_call.1} parent=39 // pred_region
          %s837 = smul.u32 2, %s35
          %s838 = ssub.s32 5, %s837
          %p839 = scmp.lt.s32.totalorder %s838, 2
          %s840 = scalar_select %p839, %s838, 2
          %s841 = smul.u32 128, %s840
          %s843 = ssub.s32 256, %s841
          %844 = vsyncadd %s830, %s843
          %p845 = scmp.ne.s32.totalorder 0, %s841
          %s846 = smul.addr %s837, 128
          %s847 = scalar_lea.hbm %s8, %s846
          %s848 = smul.u32 %s840, 8
          %s849 = sshll.u32 %s848, 4
          %s850 = sshll.u32 %s833, 4
          %s851 = int_to_ptr.vmem [resolvable:$true] %s850
          %853 = dma.vmem_to_hbm [thread:$0]  (%p845), %s851, %s849, %s847, %s830
        $region67: #{tpu_custom_call.1} parent=39 // pred_fallthru
          _
      $region40: #{tpu_custom_call.1} parent=5 // pred_fallthru
        _
      %p854 = scmp.le.s32.totalorder 2, %s30
      // Predicated region
      $region68: #{tpu_custom_call.1} parent=5 // pred_check
        %p855 = pneg %p854
      $region69: #{tpu_custom_call.1} parent=5 // pred_check_branch
        %857 = sbr.rel (%p855) target = $region71
      $region70: #{tpu_custom_call.1} parent=5 // pred_region
        %s858 = ssub.s32 %s30, 2
        // Predicated region
        $region72: #{tpu_custom_call.1} parent=70 // pred_check
          %p859 = pneg %p180
        $region73: #{tpu_custom_call.1} parent=70 // pred_check_branch
          %861 = sbr.rel (%p859) target = $region75
        $region74: #{tpu_custom_call.1} parent=70 // pred_region
          %s862 = sand.u32 %s165, 1
          %s863 = scalar_lea.sflag [#allocation9], %s862
          %s864 = sand.u32 %s165, 1
          %s865 = smul.addr %s864, 16
          %s866 = scalar_lea.vmem [#allocation12], %s865
          %867 = dma.done %s863, 256
        $region75: #{tpu_custom_call.1} parent=70 // pred_fallthru
          _
      $region71: #{tpu_custom_call.1} parent=5 // pred_fallthru
        _
    $region6: #{tpu_custom_call.1} parent=1 // loop_footer
      %s34 = sadd.s32 1, %s30
    $region7: #{tpu_custom_call.1} parent=1 // loop_footer_branch
      %29 = sbr.rel target = $region3
    $region8: #{tpu_custom_call.1} parent=1 // loop_exit
      _
    %868 = vsyncpa [#allocation8], 1
    %s869 = scalar_lea.sflag [#allocation8], 1
    %870 = vsyncpa %s869, 1
    %871 = vsyncpa [#allocation11], 1
    %s872 = scalar_lea.sflag [#allocation11], 1
    %873 = vsyncpa %s872, 1
    %874 = vsyncpa [#allocation9], 1
    %s875 = scalar_lea.sflag [#allocation9], 1
    %876 = vsyncpa %s875, 1
  %877 = vsyncmov [#allocation3]
  %s878 = vpop.sfrf %877
  %p879 = scmp.eq.s32.totalorder %s878, 0
  %p880 = pneg %p879
  %882 = shalt.err (%p880)

</llo_original>
